<compile_context>
chip_gen: v6e
topology: v6e:2x2x1
jax: 0.10.0
libtpu: 0.0.40
codegen_flags: <defaults>
</compile_context>

<pallas_src>
import jax
import jax.numpy as jnp
from jax.experimental import pallas as pl
from jax.experimental.pallas import tpu as pltpu


def linear_kernel(x_ref, w_ref, b_ref, y_ref):
    # x_ref: (N, in_f)        f32 in VMEM
    # w_ref: (out_f * in_f,)  f32 in SMEM, row-major: W[j, i] at j*in_f + i
    # b_ref: (out_f,)         f32 in SMEM
    # y_ref: (N, out_f)       f32 in VMEM
    _, in_f = x_ref.shape
    out_f = y_ref.shape[1]
    x = x_ref[...]                                       # (N, in_f)

    # Fully unrolled (out_f = in_f = 2): 4 broadcast-muls + adds on the VPU.
    cols = []
    for j in range(out_f):
        acc = x[:, 0:1] * w_ref[j * in_f + 0] + b_ref[j]     # (N, 1)
        for i in range(1, in_f):
            acc = acc + x[:, i:i + 1] * w_ref[j * in_f + i]
        cols.append(acc)

    # Single combined store of the full (N, out_f) result.
    y_ref[...] = jnp.concatenate(cols, axis=1)


@jax.jit
def linear_pallas(x, w, b):
    # x: (N, in_f), w: (out_f, in_f) (PyTorch layout), b: (out_f,)
    N, in_f = x.shape
    out_f = w.shape[0]
    w_flat = w.reshape(-1)                               # 1-D SMEM-friendly layout

    cost = pl.CostEstimate(
        flops=2 * N * in_f * out_f,
        transcendentals=0,
        bytes_accessed=4 * (N * in_f + N * out_f + out_f * in_f + out_f),
    )

    return pl.pallas_call(
        linear_kernel,
        out_shape=jax.ShapeDtypeStruct((N, out_f), x.dtype),
        in_specs=[
            pl.BlockSpec(memory_space=pltpu.MemorySpace.VMEM),   # x (whole array)
            pl.BlockSpec(memory_space=pltpu.MemorySpace.SMEM),   # W scalars (flat)
            pl.BlockSpec(memory_space=pltpu.MemorySpace.SMEM),   # b scalars
        ],
        out_specs=pl.BlockSpec(memory_space=pltpu.MemorySpace.VMEM),
        cost_estimate=cost,
    )(x, w_flat, b)


if __name__ == "__main__":
    key = jax.random.PRNGKey(0)
    kx, kw, kb = jax.random.split(key, 3)

    # Input: mirrors torch.Tensor(100, 2).uniform_(0, 1)
    x = jax.random.uniform(kx, (100, 2), dtype=jnp.float32, minval=0.0, maxval=1.0)

    # Deterministic parameter init for nn.Linear(2, 2):
    # PyTorch default uses U(-1/sqrt(in), 1/sqrt(in)) for both weight and bias.
    in_features, out_features = 2, 2
    bound = 1.0 / (in_features ** 0.5)
    w = jax.random.uniform(kw, (out_features, in_features), dtype=jnp.float32,
                           minval=-bound, maxval=bound)
    b = jax.random.uniform(kb, (out_features,), dtype=jnp.float32,
                           minval=-bound, maxval=bound)

    y = linear_pallas(x, w, b)
    jax.block_until_ready(y)

    # Correctness check against plain JAX reference.
    y_ref = x @ w.T + b
    assert y.shape == (100, 2)
    assert jnp.allclose(y, y_ref, atol=1e-5, rtol=1e-5)

    print("KERNEL_OK")
</pallas_src>

<mosaic_0001>
module attributes {stable_mosaic.version = 11 : i64} {
  func.func @linear_kernel(%arg0: memref<100x2xf32, #tpu.memory_space<vmem>>, %arg1: memref<4xf32, #tpu.memory_space<smem>>, %arg2: memref<2xf32, #tpu.memory_space<smem>>, %arg3: memref<100x2xf32, #tpu.memory_space<vmem>>) attributes {dimension_semantics = [], scalar_prefetch = 0 : i64, scratch_operands = 0 : i64, tpu.core_type = #tpu.core_type<tc>} {
    %c0 = arith.constant 0 : index
    %c0_0 = arith.constant 0 : index
    %0 = vector.load %arg0[%c0, %c0_0] : memref<100x2xf32, #tpu.memory_space<vmem>>, vector<100x2xf32>
    %1 = vector.extract_strided_slice %0 {offsets = [0, 0], sizes = [100, 1], strides = [1, 1]} : vector<100x2xf32> to vector<100x1xf32>
    %c0_1 = arith.constant 0 : index
    %2 = memref.load %arg1[%c0_1] : memref<4xf32, #tpu.memory_space<smem>>
    %3 = vector.broadcast %2 : f32 to vector<100x1xf32>
    %4 = arith.mulf %1, %3 : vector<100x1xf32>
    %c0_2 = arith.constant 0 : index
    %5 = memref.load %arg2[%c0_2] : memref<2xf32, #tpu.memory_space<smem>>
    %6 = vector.broadcast %5 : f32 to vector<100x1xf32>
    %7 = arith.addf %4, %6 : vector<100x1xf32>
    %8 = vector.extract_strided_slice %0 {offsets = [0, 1], sizes = [100, 1], strides = [1, 1]} : vector<100x2xf32> to vector<100x1xf32>
    %c1 = arith.constant 1 : index
    %9 = memref.load %arg1[%c1] : memref<4xf32, #tpu.memory_space<smem>>
    %10 = vector.broadcast %9 : f32 to vector<100x1xf32>
    %11 = arith.mulf %8, %10 : vector<100x1xf32>
    %12 = arith.addf %7, %11 : vector<100x1xf32>
    %13 = vector.extract_strided_slice %0 {offsets = [0, 0], sizes = [100, 1], strides = [1, 1]} : vector<100x2xf32> to vector<100x1xf32>
    %c2 = arith.constant 2 : index
    %14 = memref.load %arg1[%c2] : memref<4xf32, #tpu.memory_space<smem>>
    %15 = vector.broadcast %14 : f32 to vector<100x1xf32>
    %16 = arith.mulf %13, %15 : vector<100x1xf32>
    %c1_3 = arith.constant 1 : index
    %17 = memref.load %arg2[%c1_3] : memref<2xf32, #tpu.memory_space<smem>>
    %18 = vector.broadcast %17 : f32 to vector<100x1xf32>
    %19 = arith.addf %16, %18 : vector<100x1xf32>
    %20 = vector.extract_strided_slice %0 {offsets = [0, 1], sizes = [100, 1], strides = [1, 1]} : vector<100x2xf32> to vector<100x1xf32>
    %c3 = arith.constant 3 : index
    %21 = memref.load %arg1[%c3] : memref<4xf32, #tpu.memory_space<smem>>
    %22 = vector.broadcast %21 : f32 to vector<100x1xf32>
    %23 = arith.mulf %20, %22 : vector<100x1xf32>
    %24 = arith.addf %19, %23 : vector<100x1xf32>
    %25 = tpu.concatenate %12, %24 in 1 : vector<100x1xf32>, vector<100x1xf32> -> vector<100x2xf32>
    %c0_4 = arith.constant 0 : index
    %c0_5 = arith.constant 0 : index
    %26 = vector.load %arg3[%c0_4, %c0_5] : memref<100x2xf32, #tpu.memory_space<vmem>>, vector<100x2xf32>
    tpu.vector_store %arg3[%c0_4, %c0_5], %25 {strides = array<i32>} : memref<100x2xf32, #tpu.memory_space<vmem>>, vector<100x2xf32>,
    return
  }
}

</mosaic_0001>

<llo_original>
// kernel: linear_pallas.1
$region0: #{linear_pallas.1}
  #allocation0 [shape = 'u32[]', space=smem, size = 0x4, offset = 0x4, fixed_abs, tag = 'smem constant byte address 0x4 - core index']
  #allocation1 [shape = 'u32[144,128]{1,0:T(1,128)}', space=vmem, size = 0x12000, scoped, tag = 'internal scratch']
  %s0 = inlined_call_operand.vmem [shape: f32[100,2], index: 0, kind: input, shape index: {}]
  %s1 = inlined_call_operand.vmem [shape: f32[4], index: 1, kind: input, shape index: {}]
  %s2 = inlined_call_operand.vmem [shape: f32[2], index: 2, kind: input, shape index: {}]
  %s3 = inlined_call_operand.vmem [shape: f32[100,2], index: 3, kind: output, shape index: {}]
  %s4 = sld [smem:[#allocation0]]
  $region30: #{linear_pallas.1} parent=0
    _
  %s6 = ssub.s32 1, %s4
  %s7 = scalar_select 0, %s6, %s4
  $region1: #{linear_pallas.1} parent=0
    #allocation2 [shape = 'u8[512]{0}', space=smem, size = 0x200, scoped, tag = 'input window, operand 1, single buffered']
    #allocation3 [shape = 's32[1]{0}', space=sflag, size = 0x4, scoped, tag = 'scoped memory for linear_pallas.1']
    #allocation4 [shape = 'u8[512]{0}', space=smem, size = 0x200, scoped, tag = 'input window, operand 2, single buffered']
    #allocation5 [shape = 's32[1]{0}', space=sflag, size = 0x4, scoped, tag = 'scoped memory for linear_pallas.1']
    %8 = vsyncpa [#allocation3], 0
    %9 = vsyncpa [#allocation5], 0
    // Predicated region
    $region2: #{linear_pallas.1} parent=1 // pred_check
      _
    $region3: #{linear_pallas.1} parent=1 // pred_check_branch
      %11 = sbr.rel (0) target = $region5
    $region4: #{linear_pallas.1} parent=1 // pred_region
      _
    $region5: #{linear_pallas.1} parent=1 // pred_fallthru
      _
    // Predicated region
    $region6: #{linear_pallas.1} parent=1 // pred_check
      _
    $region7: #{linear_pallas.1} parent=1 // pred_check_branch
      %13 = sbr.rel (0) target = $region9
    $region8: #{linear_pallas.1} parent=1 // pred_region
      %s15 = ssub.s32 16, 16
      %16 = vsyncadd [#allocation3], %s15
      %s18 = sshll.u32 %s1, 4
      %s19 = int_to_ptr.vmem [resolvable:$true] %s18
      %21 = dma.vmem_to_smem %s19, 16, [#allocation2], [#allocation3]
    $region9: #{linear_pallas.1} parent=1 // pred_fallthru
      _
    // Predicated region
    $region10: #{linear_pallas.1} parent=1 // pred_check
      _
    $region11: #{linear_pallas.1} parent=1 // pred_check_branch
      %23 = sbr.rel (0) target = $region13
    $region12: #{linear_pallas.1} parent=1 // pred_region
      %s25 = ssub.s32 16, 16
      %26 = vsyncadd [#allocation5], %s25
      %s28 = sshll.u32 %s2, 4
      %s29 = int_to_ptr.vmem [resolvable:$true] %s28
      %31 = dma.vmem_to_smem %s29, 16, [#allocation4], [#allocation5]
    $region13: #{linear_pallas.1} parent=1 // pred_fallthru
      _
    // Predicated region
    $region14: #{linear_pallas.1} parent=1 // pred_check
      _
    $region15: #{linear_pallas.1} parent=1 // pred_check_branch
      %33 = sbr.rel (0) target = $region17
    $region16: #{linear_pallas.1} parent=1 // pred_region
      %34 = dma.done [#allocation3], 16
    $region17: #{linear_pallas.1} parent=1 // pred_fallthru
      _
    // Predicated region
    $region18: #{linear_pallas.1} parent=1 // pred_check
      _
    $region19: #{linear_pallas.1} parent=1 // pred_check_branch
      %36 = sbr.rel (0) target = $region21
    $region20: #{linear_pallas.1} parent=1 // pred_region
      %37 = dma.done [#allocation5], 16
    $region21: #{linear_pallas.1} parent=1 // pred_fallthru
      _
    %38 = sfence
    %v39 = vld [vmem:[%s0] sm:$0xff]
    %v40 = vld [vmem:[%s0 + $0x8] sm:$0xff]
    %v41 = vld [vmem:[%s0 + $0x10] sm:$0xff]
    %v42 = vld [vmem:[%s0 + $0x18] sm:$0xff]
    %v43 = vld [vmem:[%s0 + $0x20] sm:$0xff]
    %v44 = vld [vmem:[%s0 + $0x28] sm:$0xff]
    %v45 = vld [vmem:[%s0 + $0x30] sm:$0xff]
    %v46 = vld [vmem:[%s0 + $0x38] sm:$0xff]
    %v47 = vld [vmem:[%s0 + $0x40] sm:$0xff]
    %v48 = vld [vmem:[%s0 + $0x48] sm:$0xff]
    %v49 = vld [vmem:[%s0 + $0x50] sm:$0xff]
    %v50 = vld [vmem:[%s0 + $0x58] sm:$0xff]
    %v51 = vld [vmem:[%s0 + $0x60] sm:$0xf]
    %s52 = sld [smem:[#allocation2]]
    %v53 = vstv %s52
    %v54 = vmul.f32 %v39, %v53
    %v55 = vmul.f32 %v40, %v53
    %v56 = vmul.f32 %v41, %v53
    %v57 = vmul.f32 %v42, %v53
    %v58 = vmul.f32 %v43, %v53
    %v59 = vmul.f32 %v44, %v53
    %v60 = vmul.f32 %v45, %v53
    %v61 = vmul.f32 %v46, %v53
    %v62 = vmul.f32 %v47, %v53
    %v63 = vmul.f32 %v48, %v53
    %v64 = vmul.f32 %v49, %v53
    %v65 = vmul.f32 %v50, %v53
    %v66 = vmul.f32 %v51, %v53
    %s67 = sld [smem:[#allocation4]]
    %v68 = vstv %s67
    %v69 = vadd.f32 %v54, %v68
    %v70 = vadd.f32 %v55, %v68
    %v71 = vadd.f32 %v56, %v68
    %v72 = vadd.f32 %v57, %v68
    %v73 = vadd.f32 %v58, %v68
    %v74 = vadd.f32 %v59, %v68
    %v75 = vadd.f32 %v60, %v68
    %v76 = vadd.f32 %v61, %v68
    %v77 = vadd.f32 %v62, %v68
    %v78 = vadd.f32 %v63, %v68
    %v79 = vadd.f32 %v64, %v68
    %v80 = vadd.f32 %v65, %v68
    %v81 = vadd.f32 %v66, %v68
    %s82 = sld [smem:[#allocation2 + $0x1]]
    %v83 = vstv %s82
    %v84 = vmul.f32 %v39, %v83
    %v85 = vmul.f32 %v40, %v83
    %v86 = vmul.f32 %v41, %v83
    %v87 = vmul.f32 %v42, %v83
    %v88 = vmul.f32 %v43, %v83
    %v89 = vmul.f32 %v44, %v83
    %v90 = vmul.f32 %v45, %v83
    %v91 = vmul.f32 %v46, %v83
    %v92 = vmul.f32 %v47, %v83
    %v93 = vmul.f32 %v48, %v83
    %v94 = vmul.f32 %v49, %v83
    %v95 = vmul.f32 %v50, %v83
    %v96 = vmul.f32 %v51, %v83
    %110 = vrot.lane.b32.xlu0 %v84, 127
    %v111 = vpop.permute.xlu0 %110
    %112 = vrot.lane.b32.xlu0 %v85, 127
    %v113 = vpop.permute.xlu0 %112
    %114 = vrot.lane.b32.xlu0 %v86, 127
    %v115 = vpop.permute.xlu0 %114
    %116 = vrot.lane.b32.xlu0 %v87, 127
    %v117 = vpop.permute.xlu0 %116
    %118 = vrot.lane.b32.xlu0 %v88, 127
    %v119 = vpop.permute.xlu0 %118
    %120 = vrot.lane.b32.xlu0 %v89, 127
    %v121 = vpop.permute.xlu0 %120
    %122 = vrot.lane.b32.xlu0 %v90, 127
    %v123 = vpop.permute.xlu0 %122
    %124 = vrot.lane.b32.xlu0 %v91, 127
    %v125 = vpop.permute.xlu0 %124
    %126 = vrot.lane.b32.xlu0 %v92, 127
    %v127 = vpop.permute.xlu0 %126
    %128 = vrot.lane.b32.xlu0 %v93, 127
    %v129 = vpop.permute.xlu0 %128
    %130 = vrot.lane.b32.xlu0 %v94, 127
    %v131 = vpop.permute.xlu0 %130
    %132 = vrot.lane.b32.xlu0 %v95, 127
    %v133 = vpop.permute.xlu0 %132
    %134 = vrot.lane.b32.xlu0 %v96, 127
    %v135 = vpop.permute.xlu0 %134
    %v149 = vadd.f32 %v69, %v111
    %v150 = vadd.f32 %v70, %v113
    %v151 = vadd.f32 %v71, %v115
    %v152 = vadd.f32 %v72, %v117
    %v153 = vadd.f32 %v73, %v119
    %v154 = vadd.f32 %v74, %v121
    %v155 = vadd.f32 %v75, %v123
    %v156 = vadd.f32 %v76, %v125
    %v157 = vadd.f32 %v77, %v127
    %v158 = vadd.f32 %v78, %v129
    %v159 = vadd.f32 %v79, %v131
    %v160 = vadd.f32 %v80, %v133
    %v161 = vadd.f32 %v81, %v135
    %s162 = sld [smem:[#allocation2 + $0x2]]
    %v163 = vstv %s162
    %v164 = vmul.f32 %v39, %v163
    %v165 = vmul.f32 %v40, %v163
    %v166 = vmul.f32 %v41, %v163
    %v167 = vmul.f32 %v42, %v163
    %v168 = vmul.f32 %v43, %v163
    %v169 = vmul.f32 %v44, %v163
    %v170 = vmul.f32 %v45, %v163
    %v171 = vmul.f32 %v46, %v163
    %v172 = vmul.f32 %v47, %v163
    %v173 = vmul.f32 %v48, %v163
    %v174 = vmul.f32 %v49, %v163
    %v175 = vmul.f32 %v50, %v163
    %v176 = vmul.f32 %v51, %v163
    %s177 = sld [smem:[#allocation4 + $0x1]]
    %v178 = vstv %s177
    %v179 = vadd.f32 %v164, %v178
    %v180 = vadd.f32 %v165, %v178
    %v181 = vadd.f32 %v166, %v178
    %v182 = vadd.f32 %v167, %v178
    %v183 = vadd.f32 %v168, %v178
    %v184 = vadd.f32 %v169, %v178
    %v185 = vadd.f32 %v170, %v178
    %v186 = vadd.f32 %v171, %v178
    %v187 = vadd.f32 %v172, %v178
    %v188 = vadd.f32 %v173, %v178
    %v189 = vadd.f32 %v174, %v178
    %v190 = vadd.f32 %v175, %v178
    %v191 = vadd.f32 %v176, %v178
    %s192 = sld [smem:[#allocation2 + $0x3]]
    %v193 = vstv %s192
    %v194 = vmul.f32 %v39, %v193
    %v195 = vmul.f32 %v40, %v193
    %v196 = vmul.f32 %v41, %v193
    %v197 = vmul.f32 %v42, %v193
    %v198 = vmul.f32 %v43, %v193
    %v199 = vmul.f32 %v44, %v193
    %v200 = vmul.f32 %v45, %v193
    %v201 = vmul.f32 %v46, %v193
    %v202 = vmul.f32 %v47, %v193
    %v203 = vmul.f32 %v48, %v193
    %v204 = vmul.f32 %v49, %v193
    %v205 = vmul.f32 %v50, %v193
    %v206 = vmul.f32 %v51, %v193
    %220 = vrot.lane.b32.xlu0 %v194, 127
    %v221 = vpop.permute.xlu0 %220
    %222 = vrot.lane.b32.xlu0 %v195, 127
    %v223 = vpop.permute.xlu0 %222
    %224 = vrot.lane.b32.xlu0 %v196, 127
    %v225 = vpop.permute.xlu0 %224
    %226 = vrot.lane.b32.xlu0 %v197, 127
    %v227 = vpop.permute.xlu0 %226
    %228 = vrot.lane.b32.xlu0 %v198, 127
    %v229 = vpop.permute.xlu0 %228
    %230 = vrot.lane.b32.xlu0 %v199, 127
    %v231 = vpop.permute.xlu0 %230
    %232 = vrot.lane.b32.xlu0 %v200, 127
    %v233 = vpop.permute.xlu0 %232
    %234 = vrot.lane.b32.xlu0 %v201, 127
    %v235 = vpop.permute.xlu0 %234
    %236 = vrot.lane.b32.xlu0 %v202, 127
    %v237 = vpop.permute.xlu0 %236
    %238 = vrot.lane.b32.xlu0 %v203, 127
    %v239 = vpop.permute.xlu0 %238
    %240 = vrot.lane.b32.xlu0 %v204, 127
    %v241 = vpop.permute.xlu0 %240
    %242 = vrot.lane.b32.xlu0 %v205, 127
    %v243 = vpop.permute.xlu0 %242
    %244 = vrot.lane.b32.xlu0 %v206, 127
    %v245 = vpop.permute.xlu0 %244
    %v259 = vadd.f32 %v179, %v221
    %v260 = vadd.f32 %v180, %v223
    %v261 = vadd.f32 %v181, %v225
    %v262 = vadd.f32 %v182, %v227
    %v263 = vadd.f32 %v183, %v229
    %v264 = vadd.f32 %v184, %v231
    %v265 = vadd.f32 %v185, %v233
    %v266 = vadd.f32 %v186, %v235
    %v267 = vadd.f32 %v187, %v237
    %v268 = vadd.f32 %v188, %v239
    %v269 = vadd.f32 %v189, %v241
    %v270 = vadd.f32 %v190, %v243
    %v271 = vadd.f32 %v191, %v245
    %285 = vrot.lane.b32.xlu0 %v259, 1
    %v286 = vpop.permute.xlu0 %285
    %287 = vrot.lane.b32.xlu0 %v260, 1
    %v288 = vpop.permute.xlu0 %287
    %289 = vrot.lane.b32.xlu0 %v261, 1
    %v290 = vpop.permute.xlu0 %289
    %291 = vrot.lane.b32.xlu0 %v262, 1
    %v292 = vpop.permute.xlu0 %291
    %293 = vrot.lane.b32.xlu0 %v263, 1
    %v294 = vpop.permute.xlu0 %293
    %295 = vrot.lane.b32.xlu0 %v264, 1
    %v296 = vpop.permute.xlu0 %295
    %297 = vrot.lane.b32.xlu0 %v265, 1
    %v298 = vpop.permute.xlu0 %297
    %299 = vrot.lane.b32.xlu0 %v266, 1
    %v300 = vpop.permute.xlu0 %299
    %301 = vrot.lane.b32.xlu0 %v267, 1
    %v302 = vpop.permute.xlu0 %301
    %303 = vrot.lane.b32.xlu0 %v268, 1
    %v304 = vpop.permute.xlu0 %303
    %305 = vrot.lane.b32.xlu0 %v269, 1
    %v306 = vpop.permute.xlu0 %305
    %307 = vrot.lane.b32.xlu0 %v270, 1
    %v308 = vpop.permute.xlu0 %307
    %309 = vrot.lane.b32.xlu0 %v271, 1
    %v310 = vpop.permute.xlu0 %309
    %vm324 = vcmask 7168
    %v325 = vsel %vm324, %v149, %v286
    %v326 = vsel %vm324, %v150, %v288
    %v327 = vsel %vm324, %v151, %v290
    %v328 = vsel %vm324, %v152, %v292
    %v329 = vsel %vm324, %v153, %v294
    %v330 = vsel %vm324, %v154, %v296
    %v331 = vsel %vm324, %v155, %v298
    %v332 = vsel %vm324, %v156, %v300
    %v333 = vsel %vm324, %v157, %v302
    %v334 = vsel %vm324, %v158, %v304
    %v335 = vsel %vm324, %v159, %v306
    %v336 = vsel %vm324, %v160, %v308
    %v337 = vsel %vm324, %v161, %v310
    %vm338 = vcmask 15360
    %339 = vst.msk [vmem:[%s3] sm:$0xff] %vm338, %v325
    %340 = vst.msk [vmem:[%s3 + $0x8] sm:$0xff] %vm338, %v326
    %341 = vst.msk [vmem:[%s3 + $0x10] sm:$0xff] %vm338, %v327
    %342 = vst.msk [vmem:[%s3 + $0x18] sm:$0xff] %vm338, %v328
    %343 = vst.msk [vmem:[%s3 + $0x20] sm:$0xff] %vm338, %v329
    %344 = vst.msk [vmem:[%s3 + $0x28] sm:$0xff] %vm338, %v330
    %345 = vst.msk [vmem:[%s3 + $0x30] sm:$0xff] %vm338, %v331
    %346 = vst.msk [vmem:[%s3 + $0x38] sm:$0xff] %vm338, %v332
    %347 = vst.msk [vmem:[%s3 + $0x40] sm:$0xff] %vm338, %v333
    %348 = vst.msk [vmem:[%s3 + $0x48] sm:$0xff] %vm338, %v334
    %349 = vst.msk [vmem:[%s3 + $0x50] sm:$0xff] %vm338, %v335
    %350 = vst.msk [vmem:[%s3 + $0x58] sm:$0xff] %vm338, %v336
    %vm351 = vcmask 11264
    %352 = vst.msk [vmem:[%s3 + $0x60] sm:$0xf] %vm351, %v337
    // Predicated region
    $region22: #{linear_pallas.1} parent=1 // pred_check
      _
    $region23: #{linear_pallas.1} parent=1 // pred_check_branch
      %354 = sbr.rel (0) target = $region25
    $region24: #{linear_pallas.1} parent=1 // pred_region
      _
    $region25: #{linear_pallas.1} parent=1 // pred_fallthru
      _
    // Predicated region
    $region26: #{linear_pallas.1} parent=1 // pred_check
      _
    $region27: #{linear_pallas.1} parent=1 // pred_check_branch
      %356 = sbr.rel (0) target = $region29
    $region28: #{linear_pallas.1} parent=1 // pred_region
      _
    $region29: #{linear_pallas.1} parent=1 // pred_fallthru
      _
    %357 = vsyncpa [#allocation3], 1
    %358 = vsyncpa [#allocation5], 1

</llo_original>
